<compile_context>
chip_gen: v6e
topology: v6e:2x2x1
jax: 0.10.0
libtpu: 0.0.40
codegen_flags: <defaults>
</compile_context>

<pallas_src>
import jax
import jax.numpy as jnp
from jax.experimental import pallas as pl
from jax.experimental.pallas import tpu as pltpu


def _make_fusion_kernel(n):
    """Kernel over n separate input tiles: o = sum_i x_i * coef[i]."""

    def kernel(coef_ref, *refs):
        # coef_ref: SMEM (n,) f32 coefficients [1 - sum(w), w_0, ..., w_{n-2}]
        # refs[:n]: VMEM (row_tile, lanes) input tiles
        # refs[n]:  VMEM (row_tile, lanes) output tile
        x_refs = refs[:n]
        o_ref = refs[n]
        acc = x_refs[0][...].astype(jnp.float32) * coef_ref[0]
        for i in range(1, n):
            acc = acc + x_refs[i][...].astype(jnp.float32) * coef_ref[i]
        o_ref[...] = acc.astype(o_ref.dtype)

    return kernel


def _cdiv(a, b):
    return -(-a // b)


def _round_up(x, m):
    return _cdiv(x, m) * m


def _sublane_multiple(itemsize):
    # Sub-32-bit dtypes pack along sublanes; keep tiles on native boundaries.
    return {4: 8, 2: 16, 1: 32}.get(itemsize, 8)


def _choose_lanes(total):
    """Widest lane count (multiple of 128) that fits the data well."""
    # Prefer an exact divisor (zero padding) ...
    for lanes in (1024, 512, 256, 128):
        if total % lanes == 0 and total >= lanes * 8:
            return lanes
    # ... else the widest that still leaves >= 8 sublanes of real data.
    for lanes in (1024, 512, 256, 128):
        if total >= lanes * 8:
            return lanes
    return 128


def _generation_budget(n_inputs, itemsize):
    """Return (per_array_tile_bytes, vmem_limit_bytes_or_None) for this TPU."""
    kind = ""
    try:
        kind = jax.devices()[0].device_kind.lower()
    except Exception:
        pass
    if "v7" in kind:
        # 64 MiB VMEM / TensorCore: ~4 MiB tiles, raise scoped limit to 48 MiB.
        per_array, limit = 4 << 20, 48 << 20
    elif "v6" in kind:
        # 128 MiB physical VMEM: ~4 MiB tiles, raise scoped limit to 64 MiB.
        per_array, limit = 4 << 20, 64 << 20
    elif "v5" in kind:
        # Stay inside the 16 MiB scoped-VMEM default; bigger tiles buy little
        # at ~820 GB/s HBM bandwidth anyway.
        per_array, limit = 1 << 20, None
    else:
        # Unknown generation: conservative sizing that fits every default.
        per_array, limit = 1 << 20, None
    # Keep (n_inputs + 1) double-buffered tiles within ~75% of the scoped limit.
    scoped = limit if limit is not None else (16 << 20)
    cap = max(128 * 8 * itemsize, (scoped * 3 // 4) // ((n_inputs + 1) * 2))
    return min(per_array, cap), limit


def output_fusion(inputs, fuse_weight, *, donate_input0=False,
                  min_pallas_bytes=256 << 10):
    """Pallas implementation of OutputFusion.forward (fusion_type='sum').

    inputs:      list/tuple of N arrays, all the same shape (e.g. B, C, H, W).
    fuse_weight: array of shape (N-1,).
    Returns an array of the same shape/dtype as inputs[0].
    """
    n = len(inputs)
    assert fuse_weight.shape == (n - 1,), "fusion n_input not right"
    shape = inputs[0].shape
    dtype = inputs[0].dtype
    itemsize = jnp.dtype(dtype).itemsize

    total = 1
    for d in shape:
        total *= d

    # Precompute the full N-vector of coefficients once, wrapper-side.
    w = fuse_weight.astype(jnp.float32)
    coef = jnp.concatenate([(1.0 - jnp.sum(w))[None], w])  # (N,) f32

    # Tiny tensors: pallas_call fixed cost (launch + (n+1) DMA setups)
    # dominates; let XLA fuse the elementwise op instead.
    if total * itemsize < min_pallas_bytes:
        ret = inputs[0].astype(jnp.float32) * coef[0]
        for i in range(1, n):
            ret = ret + inputs[i].astype(jnp.float32) * coef[i]
        return ret.astype(dtype)

    # --- lane-dense layout + generation-aware row tiling -------------------
    lanes = _choose_lanes(total)
    sub = _sublane_multiple(itemsize)
    rows = _cdiv(total, lanes)

    per_array_bytes, vmem_limit = _generation_budget(n, itemsize)
    row_tile = max(sub, (per_array_bytes // (lanes * itemsize)) // sub * sub)
    # Never allocate a tile larger than the (sublane-rounded) data itself.
    row_tile = min(row_tile, _round_up(rows, sub))
    # Guarantee >= 2 grid steps where possible (megacore / v7x parallelism).
    if rows > 2 * sub:
        row_tile = min(row_tile, _round_up(_cdiv(rows, 2), sub))

    padded_rows = _round_up(rows, row_tile)      # exact multiple of row_tile
    padded_total = padded_rows * lanes
    grid = (padded_rows // row_tile,)

    def _flatten(x):
        f = x.reshape(-1)
        if padded_total != total:
            f = jnp.pad(f, (0, padded_total - total))
        return f.reshape(padded_rows, lanes)

    flat = [_flatten(x) for x in inputs]

    block = pl.BlockSpec((row_tile, lanes), lambda i: (i, 0))

    kwargs = {}
    if donate_input0:
        # Operand 0 is the SMEM coefficient vector, so inputs[0] is flat
        # operand index 1.  Only legal if the caller never reads inputs[0]
        # again; when padding was applied the alias targets the padded copy,
        # not the caller's original buffer.
        kwargs["input_output_aliases"] = {1: 0}

    out2d = pl.pallas_call(
        _make_fusion_kernel(n),
        out_shape=jax.ShapeDtypeStruct((padded_rows, lanes), dtype),
        grid=grid,
        in_specs=[pl.BlockSpec(memory_space=pltpu.SMEM)] + [block] * n,
        out_specs=block,
        compiler_params=pltpu.CompilerParams(
            dimension_semantics=("parallel",),
            vmem_limit_bytes=vmem_limit),
        cost_estimate=pl.CostEstimate(
            flops=2 * n * total,
            transcendentals=0,
            bytes_accessed=(n + 1) * total * itemsize),
        **kwargs,
    )(coef, *flat)

    out = out2d.reshape(-1)
    if padded_total != total:
        out = out[:total]
    return out.reshape(shape)


def output_fusion_ref(inputs, fuse_weight):
    """Pure-JAX reference matching the PyTorch forward exactly."""
    ret = inputs[0] * (1.0 - jnp.sum(fuse_weight))
    for i in range(1, len(inputs)):
        ret = ret + inputs[i] * fuse_weight[i - 1]
    return ret


if __name__ == "__main__":
    # N=3 inputs of shape (2, 4, 16, 16), matching the module's usage.
    n_input = 3
    B, C, H, W = 2, 4, 16, 16

    key = jax.random.PRNGKey(0)
    keys = jax.random.split(key, n_input)
    inputs = [jax.random.normal(k, (B, C, H, W), dtype=jnp.float32) for k in keys]

    # Default module init: initial = [1 / n_input] * (n_input - 1)
    fuse_weight = jnp.full((n_input - 1,), 1.0 / n_input, dtype=jnp.float32)

    # min_pallas_bytes=0 forces the Pallas path even for this tiny test tensor.
    out = output_fusion(inputs, fuse_weight, min_pallas_bytes=0)
    out = jax.block_until_ready(out)

    ref = output_fusion_ref(inputs, fuse_weight)
    assert out.shape == (B, C, H, W)
    assert out.dtype == inputs[0].dtype
    assert jnp.allclose(out, ref, atol=1e-5, rtol=1e-5), "mismatch vs reference"

    # Exercise the padding path: element count not a multiple of 128.
    shape2 = (2, 3, 33, 37)  # 7326 elements
    keys2 = jax.random.split(jax.random.PRNGKey(1), n_input)
    inputs2 = [jax.random.normal(k, shape2, dtype=jnp.float32) for k in keys2]
    out2 = jax.block_until_ready(
        output_fusion(inputs2, fuse_weight, min_pallas_bytes=0))
    ref2 = output_fusion_ref(inputs2, fuse_weight)
    assert out2.shape == shape2
    assert jnp.allclose(out2, ref2, atol=1e-5, rtol=1e-5), "padded-path mismatch"

    print("KERNEL_OK")
</pallas_src>

<mosaic_0001>
module attributes {stable_mosaic.version = 11 : i64} {
  func.func @kernel(%arg0: i32, %arg1: memref<3xf32, #tpu.memory_space<smem>>, %arg2: memref<8x256xf32, #tpu.memory_space<vmem>>, %arg3: memref<8x256xf32, #tpu.memory_space<vmem>>, %arg4: memref<8x256xf32, #tpu.memory_space<vmem>>, %arg5: memref<8x256xf32, #tpu.memory_space<vmem>>) attributes {dimension_semantics = [#tpu.dimension_semantics<parallel>], iteration_bounds = array<i64: 1>, scalar_prefetch = 0 : i64, scratch_operands = 0 : i64, tpu.core_type = #tpu.core_type<tc>, window_params = [{transform_indices = @transform_0, window_bounds = array<i64: 3>}, {transform_indices = @transform_1, window_bounds = array<i64: 8, 256>}, {transform_indices = @transform_2, window_bounds = array<i64: 8, 256>}, {transform_indices = @transform_3, window_bounds = array<i64: 8, 256>}, {transform_indices = @transform_4, window_bounds = array<i64: 8, 256>}]} {
    %c0 = arith.constant 0 : index
    %c0_0 = arith.constant 0 : index
    %0 = vector.load %arg2[%c0, %c0_0] : memref<8x256xf32, #tpu.memory_space<vmem>>, vector<8x256xf32>
    %c0_1 = arith.constant 0 : index
    %1 = memref.load %arg1[%c0_1] : memref<3xf32, #tpu.memory_space<smem>>
    %2 = vector.broadcast %1 : f32 to vector<8x256xf32>
    %3 = arith.mulf %0, %2 : vector<8x256xf32>
    %c0_2 = arith.constant 0 : index
    %c0_3 = arith.constant 0 : index
    %4 = vector.load %arg3[%c0_2, %c0_3] : memref<8x256xf32, #tpu.memory_space<vmem>>, vector<8x256xf32>
    %c1 = arith.constant 1 : index
    %5 = memref.load %arg1[%c1] : memref<3xf32, #tpu.memory_space<smem>>
    %6 = vector.broadcast %5 : f32 to vector<8x256xf32>
    %7 = arith.mulf %4, %6 : vector<8x256xf32>
    %8 = arith.addf %3, %7 : vector<8x256xf32>
    %c0_4 = arith.constant 0 : index
    %c0_5 = arith.constant 0 : index
    %9 = vector.load %arg4[%c0_4, %c0_5] : memref<8x256xf32, #tpu.memory_space<vmem>>, vector<8x256xf32>
    %c2 = arith.constant 2 : index
    %10 = memref.load %arg1[%c2] : memref<3xf32, #tpu.memory_space<smem>>
    %11 = vector.broadcast %10 : f32 to vector<8x256xf32>
    %12 = arith.mulf %9, %11 : vector<8x256xf32>
    %13 = arith.addf %8, %12 : vector<8x256xf32>
    %c0_6 = arith.constant 0 : index
    %c0_7 = arith.constant 0 : index
    %14 = vector.load %arg5[%c0_6, %c0_7] : memref<8x256xf32, #tpu.memory_space<vmem>>, vector<8x256xf32>
    tpu.vector_store %arg5[%c0_6, %c0_7], %13 {strides = array<i32>} : memref<8x256xf32, #tpu.memory_space<vmem>>, vector<8x256xf32>,
    return
  }
  func.func @transform_0(%arg0: i32) -> i32 {
    %c0_i32 = arith.constant 0 : i32
    %c0_i32_0 = arith.constant 0 : i32
    return %c0_i32 : i32
  }
  func.func @transform_1(%arg0: i32) -> (i32, i32) {
    %c0_i32 = arith.constant 0 : i32
    %c0_i32_0 = arith.constant 0 : i32
    return %arg0, %c0_i32 : i32, i32
  }
  func.func @transform_2(%arg0: i32) -> (i32, i32) {
    %c0_i32 = arith.constant 0 : i32
    %c0_i32_0 = arith.constant 0 : i32
    return %arg0, %c0_i32 : i32, i32
  }
  func.func @transform_3(%arg0: i32) -> (i32, i32) {
    %c0_i32 = arith.constant 0 : i32
    %c0_i32_0 = arith.constant 0 : i32
    return %arg0, %c0_i32 : i32, i32
  }
  func.func @transform_4(%arg0: i32) -> (i32, i32) {
    %c0_i32 = arith.constant 0 : i32
    %c0_i32_0 = arith.constant 0 : i32
    return %arg0, %c0_i32 : i32, i32
  }
}

</mosaic_0001>

<llo_original>
// kernel: tpu_custom_call.1
$region0: #{tpu_custom_call.1}
  #allocation0 [shape = 'u32[]', space=smem, size = 0x4, offset = 0x4, fixed_abs, tag = 'smem constant byte address 0x4 - core index']
  #allocation1 [shape = 'u32[144,128]{1,0:T(1,128)}', space=vmem, size = 0x12000, scoped, tag = 'internal scratch']
  %s0 = inlined_call_operand.hbm [shape: f32[3], index: 0, kind: input, shape index: {}]
  %s1 = inlined_call_operand.hbm [shape: f32[8,256], index: 1, kind: input, shape index: {}]
  %s2 = inlined_call_operand.hbm [shape: f32[8,256], index: 2, kind: input, shape index: {}]
  %s3 = inlined_call_operand.hbm [shape: f32[8,256], index: 3, kind: input, shape index: {}]
  %s4 = inlined_call_operand.hbm [shape: f32[8,256], index: 4, kind: output, shape index: {}]
  %s5 = sld [smem:[#allocation0]]
  $region42: #{tpu_custom_call.1} parent=0
    _
  %s7 = ssub.s32 1, %s5
  %s8 = scalar_select 0, %s7, %s5
  $region1: #{tpu_custom_call.1} parent=0
    #allocation2 [shape = 'u8[512]{0}', space=smem, size = 0x200, scoped, tag = 'input window, operand 0, single buffered']
    #allocation3 [shape = 's32[1]{0}', space=sflag, size = 0x4, scoped, tag = 'scoped memory for tpu_custom_call.1']
    #allocation4 [shape = 's32[1]{0}', space=sflag, size = 0x4, scoped, tag = 'scoped memory for tpu_custom_call.1']
    #allocation5 [shape = 's32[1]{0}', space=sflag, size = 0x4, scoped, tag = 'scoped memory for tpu_custom_call.1']
    #allocation6 [shape = 'u8[8192]{0}', space=vmem, size = 0x2000, scoped, tag = 'input window, operand 1, single buffered']
    #allocation7 [shape = 'u8[8192]{0}', space=vmem, size = 0x2000, scoped, tag = 'input window, operand 2, single buffered']
    #allocation8 [shape = 's32[1]{0}', space=sflag, size = 0x4, scoped, tag = 'scoped memory for tpu_custom_call.1']
    #allocation9 [shape = 'u8[8192]{0}', space=vmem, size = 0x2000, scoped, tag = 'input window, operand 3, single buffered']
    #allocation10 [shape = 'u8[8192]{0}', space=vmem, size = 0x2000, scoped, tag = 'output window, operand 0, single buffered']
    %9 = vsyncpa [#allocation5], 0
    %10 = vsyncpa [#allocation3], 0
    %11 = vsyncpa [#allocation8], 0
    %12 = vsyncpa [#allocation4], 0
    // Predicated region
    $region2: #{tpu_custom_call.1} parent=1 // pred_check
      _
    $region3: #{tpu_custom_call.1} parent=1 // pred_check_branch
      %14 = sbr.rel (0) target = $region5
    $region4: #{tpu_custom_call.1} parent=1 // pred_region
      %s16 = ssub.s32 16, 16
      %17 = vsyncadd [#allocation5], %s16
      %20 = dma.hbm_to_smem %s0, 16, [#allocation2], [#allocation5]
    $region5: #{tpu_custom_call.1} parent=1 // pred_fallthru
      _
    // Predicated region
    $region6: #{tpu_custom_call.1} parent=1 // pred_check
      _
    $region7: #{tpu_custom_call.1} parent=1 // pred_check_branch
      %22 = sbr.rel (0) target = $region9
    $region8: #{tpu_custom_call.1} parent=1 // pred_region
      %s24 = ssub.s32 256, 256
      %25 = vsyncadd [#allocation3], %s24
      %s27 = sshll.u32 [#allocation6], 4
      %s28 = int_to_ptr.vmem [resolvable:$true] %s27
      %30 = dma.hbm_to_vmem [thread:$0]  %s1, 256, %s28, [#allocation3]
    $region9: #{tpu_custom_call.1} parent=1 // pred_fallthru
      _
    // Predicated region
    $region10: #{tpu_custom_call.1} parent=1 // pred_check
      _
    $region11: #{tpu_custom_call.1} parent=1 // pred_check_branch
      %32 = sbr.rel (0) target = $region13
    $region12: #{tpu_custom_call.1} parent=1 // pred_region
      %s34 = ssub.s32 256, 256
      %35 = vsyncadd [#allocation8], %s34
      %s37 = sshll.u32 [#allocation7], 4
      %s38 = int_to_ptr.vmem [resolvable:$true] %s37
      %40 = dma.hbm_to_vmem [thread:$0]  %s2, 256, %s38, [#allocation8]
    $region13: #{tpu_custom_call.1} parent=1 // pred_fallthru
      _
    // Predicated region
    $region14: #{tpu_custom_call.1} parent=1 // pred_check
      _
    $region15: #{tpu_custom_call.1} parent=1 // pred_check_branch
      %42 = sbr.rel (0) target = $region17
    $region16: #{tpu_custom_call.1} parent=1 // pred_region
      %s44 = ssub.s32 256, 256
      %45 = vsyncadd [#allocation8], %s44
      %s47 = sshll.u32 [#allocation9], 4
      %s48 = int_to_ptr.vmem [resolvable:$true] %s47
      %50 = dma.hbm_to_vmem [thread:$0]  %s3, 256, %s48, [#allocation8]
    $region17: #{tpu_custom_call.1} parent=1 // pred_fallthru
      _
    // Predicated region
    $region18: #{tpu_custom_call.1} parent=1 // pred_check
      _
    $region19: #{tpu_custom_call.1} parent=1 // pred_check_branch
      %52 = sbr.rel (0) target = $region21
    $region20: #{tpu_custom_call.1} parent=1 // pred_region
      %53 = dma.done [#allocation5], 16
    $region21: #{tpu_custom_call.1} parent=1 // pred_fallthru
      _
    // Predicated region
    $region22: #{tpu_custom_call.1} parent=1 // pred_check
      _
    $region23: #{tpu_custom_call.1} parent=1 // pred_check_branch
      %55 = sbr.rel (0) target = $region25
    $region24: #{tpu_custom_call.1} parent=1 // pred_region
      %56 = dma.done [#allocation3], 256
    $region25: #{tpu_custom_call.1} parent=1 // pred_fallthru
      _
    // Predicated region
    $region26: #{tpu_custom_call.1} parent=1 // pred_check
      _
    $region27: #{tpu_custom_call.1} parent=1 // pred_check_branch
      %58 = sbr.rel (0) target = $region29
    $region28: #{tpu_custom_call.1} parent=1 // pred_region
      %59 = dma.done [#allocation8], 256
    $region29: #{tpu_custom_call.1} parent=1 // pred_fallthru
      _
    // Predicated region
    $region30: #{tpu_custom_call.1} parent=1 // pred_check
      _
    $region31: #{tpu_custom_call.1} parent=1 // pred_check_branch
      %61 = sbr.rel (0) target = $region33
    $region32: #{tpu_custom_call.1} parent=1 // pred_region
      %62 = dma.done [#allocation8], 256
    $region33: #{tpu_custom_call.1} parent=1 // pred_fallthru
      _
    %63 = sfence
    %v64 = vld [vmem:[#allocation6] sm:$0xff]
    %v65 = vld [vmem:[#allocation6 + $0x8] sm:$0xff]
    %s66 = sld [smem:[#allocation2]]
    %v67 = vstv %s66
    %v68 = vmul.f32 %v64, %v67
    %v69 = vmul.f32 %v65, %v67
    %v70 = vld [vmem:[#allocation7] sm:$0xff]
    %v71 = vld [vmem:[#allocation7 + $0x8] sm:$0xff]
    %s72 = sld [smem:[#allocation2 + $0x1]]
    %v73 = vstv %s72
    %v74 = vmul.f32 %v70, %v73
    %v75 = vmul.f32 %v71, %v73
    %v76 = vadd.f32 %v68, %v74
    %v77 = vadd.f32 %v69, %v75
    %v78 = vld [vmem:[#allocation9] sm:$0xff]
    %v79 = vld [vmem:[#allocation9 + $0x8] sm:$0xff]
    %s80 = sld [smem:[#allocation2 + $0x2]]
    %v81 = vstv %s80
    %v82 = vmul.f32 %v78, %v81
    %v83 = vmul.f32 %v79, %v81
    %v84 = vadd.f32 %v76, %v82
    %v85 = vadd.f32 %v77, %v83
    %86 = vst [vmem:[#allocation10] sm:$0xff] %v84
    %87 = vst [vmem:[#allocation10 + $0x8] sm:$0xff] %v85
    // Predicated region
    $region34: #{tpu_custom_call.1} parent=1 // pred_check
      _
    $region35: #{tpu_custom_call.1} parent=1 // pred_check_branch
      %89 = sbr.rel (0) target = $region37
    $region36: #{tpu_custom_call.1} parent=1 // pred_region
      %s91 = ssub.s32 256, 256
      %92 = vsyncadd [#allocation4], %s91
      %s94 = sshll.u32 [#allocation10], 4
      %s95 = int_to_ptr.vmem [resolvable:$true] %s94
      %97 = dma.vmem_to_hbm [thread:$0]  %s95, 256, %s4, [#allocation4]
    $region37: #{tpu_custom_call.1} parent=1 // pred_fallthru
      _
    // Predicated region
    $region38: #{tpu_custom_call.1} parent=1 // pred_check
      _
    $region39: #{tpu_custom_call.1} parent=1 // pred_check_branch
      %99 = sbr.rel (0) target = $region41
    $region40: #{tpu_custom_call.1} parent=1 // pred_region
      %100 = dma.done [#allocation4], 256
    $region41: #{tpu_custom_call.1} parent=1 // pred_fallthru
      _
    %101 = vsyncpa [#allocation3], 1
    %102 = vsyncpa [#allocation8], 1
    %103 = vsyncpa [#allocation4], 1
    %104 = vsyncpa [#allocation5], 1

</llo_original>
